<compile_context>
chip_gen: v7x
topology: tpu7x:2x2x1
jax: 0.10.0
libtpu: 0.0.40
codegen_flags: <defaults>
</compile_context>

<pallas_src>
import functools

import jax
import jax.numpy as jnp
from jax.experimental import pallas as pl
from jax.experimental.pallas import tpu as pltpu


def _pick_tile(dim, candidates):
    """Largest candidate tile that divides `dim`; falls back to the full dim."""
    for c in candidates:
        if dim >= c and dim % c == 0:
            return c
    return dim


def qkv_lora_kernel(x_ref, w_ref, b_ref, a_ref, blora_ref, o_ref,
                    acc_ref, xa_ref):
    k = pl.program_id(2)
    nk = pl.num_programs(2)

    @pl.when(k == 0)
    def _init():
        acc_ref[...] = jnp.zeros_like(acc_ref)
        xa_ref[...] = jnp.zeros_like(xa_ref)

    x = x_ref[...]                                                   # (tm, tk)

    # Base qkv projection tile: accumulate (tm, tn) in f32.
    acc_ref[...] += jnp.dot(x, w_ref[...], preferred_element_type=jnp.float32)

    # Fused LoRA down-projection: xa += x @ [Aq | Av]   -> (tm, 2r), f32.
    xa_ref[...] += jnp.dot(x, a_ref[...], preferred_element_type=jnp.float32)

    @pl.when(k == nk - 1)
    def _finalize():
        # Epilogue only at the last K step: bias + LoRA up-projection
        # (alpha and q/v column placement are pre-folded into B_lora),
        # then one unmasked full-tile store in the caller's dtype.
        out = acc_ref[...] + b_ref[...].astype(jnp.float32)
        out = out + jnp.dot(xa_ref[...], blora_ref[...].astype(jnp.float32),
                            preferred_element_type=jnp.float32)
        o_ref[...] = out.astype(o_ref.dtype)


def qkv_with_lora(x, w_qkv, b_qkv, a_q, b_q, a_v, b_v, *, alpha,
                  tm=None, tn=None, tk=None):
    """x: (B, S, D); w_qkv: (D, 3D) pre-transposed Linear weight; b_qkv: (3D,)."""
    B, S, D = x.shape
    N = 3 * D
    M = B * S
    r = a_q.shape[1]
    R2 = 2 * r
    dtype = x.dtype

    x2 = x.reshape(M, D)
    bias2 = b_qkv.reshape(1, N).astype(dtype)
    w2 = w_qkv.astype(dtype)

    # Fuse the two rank-r down-projections: A_cat = [Aq | Av]  (D, 2r).
    a_cat = jnp.concatenate([a_q, a_v], axis=1).astype(dtype)
    # Fold alpha and the q / v column placement into one (2r, 3D) matrix
    # (zeros over the k columns) applied in the epilogue.
    b_lora = jnp.zeros((R2, N), dtype=dtype)
    b_lora = b_lora.at[:r, :D].set((alpha * b_q).astype(dtype))
    b_lora = b_lora.at[r:, 2 * D:].set((alpha * b_v).astype(dtype))

    # Tile selection: prefer large MXU-friendly tiles, fall back to full dims
    # for small / non-128-multiple shapes (block == full dim is always legal).
    tm = tm if tm is not None else _pick_tile(M, (512, 256, 128, 64, 32, 16, 8))
    tn = tn if tn is not None else _pick_tile(N, (512, 384, 256, 128))
    tk = tk if tk is not None else _pick_tile(D, (1024, 512, 256, 128))
    grid = (M // tm, N // tn, D // tk)

    # VMEM budget: double-buffered input/output tiles + f32 scratch, with
    # headroom; keeps us well inside even v7x's 64 MiB.
    itemsize = jnp.dtype(dtype).itemsize
    vmem_bytes = 2 * itemsize * (tm * tk + tk * tn + tm * tn
                                 + tk * R2 + R2 * tn + tn)
    vmem_bytes += 4 * (tm * tn + tm * R2)
    vmem_limit = max(int(1.5 * vmem_bytes) + (4 << 20), 16 << 20)

    out = pl.pallas_call(
        qkv_lora_kernel,
        out_shape=jax.ShapeDtypeStruct((M, N), dtype),
        grid_spec=pltpu.PrefetchScalarGridSpec(
            num_scalar_prefetch=0,
            grid=grid,
            in_specs=[
                pl.BlockSpec((tm, tk), lambda i, j, k: (i, k)),   # x
                pl.BlockSpec((tk, tn), lambda i, j, k: (k, j)),   # W (streamed)
                pl.BlockSpec((1, tn), lambda i, j, k: (0, j)),    # bias (K-resident)
                pl.BlockSpec((tk, R2), lambda i, j, k: (k, 0)),   # A_cat (tiny)
                pl.BlockSpec((R2, tn), lambda i, j, k: (0, j)),   # B_lora (K-resident)
            ],
            out_specs=pl.BlockSpec((tm, tn), lambda i, j, k: (i, j)),
            scratch_shapes=[
                pltpu.VMEM((tm, tn), jnp.float32),   # qkv accumulator
                pltpu.VMEM((tm, R2), jnp.float32),   # LoRA xa accumulator
            ],
        ),
        compiler_params=pltpu.CompilerParams(
            dimension_semantics=("parallel", "parallel", "arbitrary"),
            vmem_limit_bytes=vmem_limit,
        ),
    )(x2, w2, bias2, a_cat, b_lora)

    return out.reshape(B, S, N)


def reference(x, w_qkv, b_qkv, a_q, b_q, a_v, b_v, *, alpha):
    B, S, D = x.shape
    qkv = jnp.einsum("bsd,de->bse", x, w_qkv) + b_qkv
    lq = alpha * (x @ a_q @ b_q)
    lv = alpha * (x @ a_v @ b_v)
    qkv = qkv.at[:, :, :D].add(lq)
    qkv = qkv.at[:, :, -D:].add(lv)
    return qkv


def _make_inputs(key, B, S, D, rank):
    k = jax.random.split(key, 7)
    x = jax.random.normal(k[0], (B, S, D), dtype=jnp.float32)
    # nn.Linear(D, 3D): weight is (3D, D) in torch; store transposed (D, 3D).
    w_qkv = jax.random.normal(k[1], (D, 3 * D), dtype=jnp.float32) * 0.05
    b_qkv = jax.random.normal(k[2], (3 * D,), dtype=jnp.float32) * 0.05
    # LoRA params (A = randn/sqrt(rank); B is zeros in __init__, but use small
    # random values here so the LoRA path is actually exercised numerically).
    std = jnp.sqrt(jnp.float32(rank))
    a_q = jax.random.normal(k[3], (D, rank), dtype=jnp.float32) / std
    b_q = jax.random.normal(k[4], (rank, D), dtype=jnp.float32) * 0.02
    a_v = jax.random.normal(k[5], (D, rank), dtype=jnp.float32) / std
    b_v = jax.random.normal(k[6], (rank, D), dtype=jnp.float32) * 0.02
    return x, w_qkv, b_qkv, a_q, b_q, a_v, b_v


if __name__ == "__main__":
    alpha = 16.0

    # Test 1: module-sized small shapes (B=2, S=8, hidden=32, rank=4).
    args = _make_inputs(jax.random.PRNGKey(0), 2, 8, 32, 4)
    out = qkv_with_lora(*args, alpha=alpha)
    out = jax.block_until_ready(out)
    ref = reference(*args, alpha=alpha)
    assert out.shape == (2, 8, 96)
    assert out.dtype == args[0].dtype
    assert jnp.allclose(out, ref, atol=1e-4, rtol=1e-4), "mismatch (small shapes)"

    # Test 2: 128-aligned hidden dim exercising the full (M, N, K) tiled path
    # with multi-step K accumulation (grid = (2, 6, 2)).
    args2 = _make_inputs(jax.random.PRNGKey(1), 2, 64, 256, 8)
    out2 = qkv_with_lora(*args2, alpha=alpha, tm=64, tn=128, tk=128)
    out2 = jax.block_until_ready(out2)
    ref2 = reference(*args2, alpha=alpha)
    assert out2.shape == (2, 64, 768)
    assert jnp.allclose(out2, ref2, atol=1e-2, rtol=1e-2), "mismatch (tiled path)"

    print("KERNEL_OK")
</pallas_src>

<mosaic_0001>
module attributes {stable_mosaic.version = 11 : i64} {
  func.func @qkv_lora_kernel(%arg0: i32, %arg1: i32, %arg2: i32, %arg3: memref<16x32xf32, #tpu.memory_space<vmem>>, %arg4: memref<32x96xf32, #tpu.memory_space<vmem>>, %arg5: memref<1x96xf32, #tpu.memory_space<vmem>>, %arg6: memref<32x8xf32, #tpu.memory_space<vmem>>, %arg7: memref<8x96xf32, #tpu.memory_space<vmem>>, %arg8: memref<16x96xf32, #tpu.memory_space<vmem>>, %arg9: memref<16x96xf32, #tpu.memory_space<vmem>>, %arg10: memref<16x8xf32, #tpu.memory_space<vmem>>) attributes {dimension_semantics = [#tpu.dimension_semantics<parallel>, #tpu.dimension_semantics<parallel>, #tpu.dimension_semantics<arbitrary>], iteration_bounds = array<i64: 1, 1, 1>, scalar_prefetch = 0 : i64, scratch_operands = 2 : i64, tpu.core_type = #tpu.core_type<tc>, window_params = [{transform_indices = @transform_0, window_bounds = array<i64: 16, 32>}, {transform_indices = @transform_1, window_bounds = array<i64: 32, 96>}, {transform_indices = @transform_2, window_bounds = array<i64: 1, 96>}, {transform_indices = @transform_3, window_bounds = array<i64: 32, 8>}, {transform_indices = @transform_4, window_bounds = array<i64: 8, 96>}, {transform_indices = @transform_5, window_bounds = array<i64: 16, 96>}]} {
    %c0_i32 = arith.constant 0 : i32
    %0 = arith.cmpi eq, %arg2, %c0_i32 : i32
    %1 = arith.extui %0 : i1 to i32
    %c0_i32_0 = arith.constant 0 : i32
    %2 = arith.cmpi ne, %1, %c0_i32_0 : i32
    scf.if %2 {
      %cst_17 = arith.constant 0.000000e+00 : f32
      %17 = vector.broadcast %cst_17 : f32 to vector<16x96xf32>
      %c0_18 = arith.constant 0 : index
      %c0_19 = arith.constant 0 : index
      %18 = vector.load %arg9[%c0_18, %c0_19] : memref<16x96xf32, #tpu.memory_space<vmem>>, vector<16x96xf32>
      tpu.vector_store %arg9[%c0_18, %c0_19], %17 {strides = array<i32>} : memref<16x96xf32, #tpu.memory_space<vmem>>, vector<16x96xf32>,
      %cst_20 = arith.constant 0.000000e+00 : f32
      %19 = vector.broadcast %cst_20 : f32 to vector<16x8xf32>
      %c0_21 = arith.constant 0 : index
      %c0_22 = arith.constant 0 : index
      %20 = vector.load %arg10[%c0_21, %c0_22] : memref<16x8xf32, #tpu.memory_space<vmem>>, vector<16x8xf32>
      tpu.vector_store %arg10[%c0_21, %c0_22], %19 {strides = array<i32>} : memref<16x8xf32, #tpu.memory_space<vmem>>, vector<16x8xf32>,
    } else {
    }
    %c0 = arith.constant 0 : index
    %c0_1 = arith.constant 0 : index
    %3 = vector.load %arg3[%c0, %c0_1] : memref<16x32xf32, #tpu.memory_space<vmem>>, vector<16x32xf32>
    %c0_2 = arith.constant 0 : index
    %c0_3 = arith.constant 0 : index
    %4 = vector.load %arg9[%c0_2, %c0_3] : memref<16x96xf32, #tpu.memory_space<vmem>>, vector<16x96xf32>
    %c0_4 = arith.constant 0 : index
    %c0_5 = arith.constant 0 : index
    %5 = vector.load %arg4[%c0_4, %c0_5] : memref<32x96xf32, #tpu.memory_space<vmem>>, vector<32x96xf32>
    %cst = arith.constant dense<0.000000e+00> : vector<16x96xf32>
    %6 = tpu.matmul %3, %5, %cst {dimension_numbers = #tpu.dot_dimension_numbers<[1], [0], [0], [1], [0, 0, 1, 1], [], []>} : vector<16x32xf32>, vector<32x96xf32>, vector<16x96xf32> -> vector<16x96xf32>
    %7 = arith.addf %4, %6 : vector<16x96xf32>
    %c0_6 = arith.constant 0 : index
    %c0_7 = arith.constant 0 : index
    %8 = vector.load %arg9[%c0_6, %c0_7] : memref<16x96xf32, #tpu.memory_space<vmem>>, vector<16x96xf32>
    tpu.vector_store %arg9[%c0_6, %c0_7], %7 {strides = array<i32>} : memref<16x96xf32, #tpu.memory_space<vmem>>, vector<16x96xf32>,
    %c0_8 = arith.constant 0 : index
    %c0_9 = arith.constant 0 : index
    %9 = vector.load %arg10[%c0_8, %c0_9] : memref<16x8xf32, #tpu.memory_space<vmem>>, vector<16x8xf32>
    %c0_10 = arith.constant 0 : index
    %c0_11 = arith.constant 0 : index
    %10 = vector.load %arg6[%c0_10, %c0_11] : memref<32x8xf32, #tpu.memory_space<vmem>>, vector<32x8xf32>
    %cst_12 = arith.constant dense<0.000000e+00> : vector<16x8xf32>
    %11 = tpu.matmul %3, %10, %cst_12 {dimension_numbers = #tpu.dot_dimension_numbers<[1], [0], [0], [1], [0, 0, 1, 1], [], []>} : vector<16x32xf32>, vector<32x8xf32>, vector<16x8xf32> -> vector<16x8xf32>
    %12 = arith.addf %9, %11 : vector<16x8xf32>
    %c0_13 = arith.constant 0 : index
    %c0_14 = arith.constant 0 : index
    %13 = vector.load %arg10[%c0_13, %c0_14] : memref<16x8xf32, #tpu.memory_space<vmem>>, vector<16x8xf32>
    tpu.vector_store %arg10[%c0_13, %c0_14], %12 {strides = array<i32>} : memref<16x8xf32, #tpu.memory_space<vmem>>, vector<16x8xf32>,
    %c0_i32_15 = arith.constant 0 : i32
    %14 = arith.cmpi eq, %arg2, %c0_i32_15 : i32
    %15 = arith.extui %14 : i1 to i32
    %c0_i32_16 = arith.constant 0 : i32
    %16 = arith.cmpi ne, %15, %c0_i32_16 : i32
    scf.if %16 {
      %c0_17 = arith.constant 0 : index
      %c0_18 = arith.constant 0 : index
      %17 = vector.load %arg9[%c0_17, %c0_18] : memref<16x96xf32, #tpu.memory_space<vmem>>, vector<16x96xf32>
      %c0_19 = arith.constant 0 : index
      %c0_20 = arith.constant 0 : index
      %18 = vector.load %arg5[%c0_19, %c0_20] : memref<1x96xf32, #tpu.memory_space<vmem>>, vector<1x96xf32>
      %19 = vector.broadcast %18 : vector<1x96xf32> to vector<16x96xf32>
      %20 = arith.addf %17, %19 : vector<16x96xf32>
      %c0_21 = arith.constant 0 : index
      %c0_22 = arith.constant 0 : index
      %21 = vector.load %arg10[%c0_21, %c0_22] : memref<16x8xf32, #tpu.memory_space<vmem>>, vector<16x8xf32>
      %c0_23 = arith.constant 0 : index
      %c0_24 = arith.constant 0 : index
      %22 = vector.load %arg7[%c0_23, %c0_24] : memref<8x96xf32, #tpu.memory_space<vmem>>, vector<8x96xf32>
      %cst_25 = arith.constant dense<0.000000e+00> : vector<16x96xf32>
      %23 = tpu.matmul %21, %22, %cst_25 {dimension_numbers = #tpu.dot_dimension_numbers<[1], [0], [0], [1], [0, 0, 1, 1], [], []>} : vector<16x8xf32>, vector<8x96xf32>, vector<16x96xf32> -> vector<16x96xf32>
      %24 = arith.addf %20, %23 : vector<16x96xf32>
      %c0_26 = arith.constant 0 : index
      %c0_27 = arith.constant 0 : index
      %25 = vector.load %arg8[%c0_26, %c0_27] : memref<16x96xf32, #tpu.memory_space<vmem>>, vector<16x96xf32>
      tpu.vector_store %arg8[%c0_26, %c0_27], %24 {strides = array<i32>} : memref<16x96xf32, #tpu.memory_space<vmem>>, vector<16x96xf32>,
    } else {
    }
    return
  }
  func.func @transform_0(%arg0: i32, %arg1: i32, %arg2: i32) -> (i32, i32) {
    %c0_i32 = arith.constant 0 : i32
    return %arg0, %arg2 : i32, i32
  }
  func.func @transform_1(%arg0: i32, %arg1: i32, %arg2: i32) -> (i32, i32) {
    %c0_i32 = arith.constant 0 : i32
    return %arg2, %arg1 : i32, i32
  }
  func.func @transform_2(%arg0: i32, %arg1: i32, %arg2: i32) -> (i32, i32) {
    %c0_i32 = arith.constant 0 : i32
    %c0_i32_0 = arith.constant 0 : i32
    return %c0_i32, %arg1 : i32, i32
  }
  func.func @transform_3(%arg0: i32, %arg1: i32, %arg2: i32) -> (i32, i32) {
    %c0_i32 = arith.constant 0 : i32
    %c0_i32_0 = arith.constant 0 : i32
    return %arg2, %c0_i32 : i32, i32
  }
  func.func @transform_4(%arg0: i32, %arg1: i32, %arg2: i32) -> (i32, i32) {
    %c0_i32 = arith.constant 0 : i32
    %c0_i32_0 = arith.constant 0 : i32
    return %c0_i32, %arg1 : i32, i32
  }
  func.func @transform_5(%arg0: i32, %arg1: i32, %arg2: i32) -> (i32, i32) {
    %c0_i32 = arith.constant 0 : i32
    return %arg0, %arg1 : i32, i32
  }
}

</mosaic_0001>

<llo_original>
// kernel: tpu_custom_call.1
$region0: #{tpu_custom_call.1}
  #allocation0 [shape = 'u32[]', space=smem, size = 0x4, offset = 0x4, fixed_abs, tag = 'smem constant byte address 0x4 - core index']
  #allocation1 [shape = 'u32[144,128]{1,0:T(1,128)}', space=vmem, size = 0x12000, scoped, tag = 'internal scratch']
  #allocation2 [shape = 'f32[16,96]{1,0:T(8,128)}', space=vmem, size = 0x2000, scoped, tag = 'scratch operand']
  #allocation3 [shape = 'f32[16,8]{1,0:T(8,128)}', space=vmem, size = 0x2000, scoped, tag = 'scratch operand']
  %s0 = inlined_call_operand.hbm [shape: f32[16,32], index: 0, kind: input, shape index: {}]
  %s1 = inlined_call_operand.vmem [shape: f32[32,96], index: 1, kind: input, shape index: {}]
  %s2 = inlined_call_operand.vmem [shape: f32[1,96], index: 2, kind: input, shape index: {}]
  %s3 = inlined_call_operand.vmem [shape: f32[32,8], index: 3, kind: input, shape index: {}]
  %s4 = inlined_call_operand.vmem [shape: f32[8,96], index: 4, kind: input, shape index: {}]
  %s5 = inlined_call_operand.hbm [shape: f32[16,96], index: 5, kind: output, shape index: {}]
  %s6 = sld [smem:[#allocation0]]
  $region42: #{tpu_custom_call.1} parent=0
    _
  %s8 = ssub.s32 1, %s6
  %s9 = scalar_select 0, %s8, %s6
  $region1: #{tpu_custom_call.1} parent=0
    #allocation4 [shape = 'u8[8192]{0}', space=vmem, size = 0x2000, scoped, tag = 'input window, operand 0, single buffered']
    #allocation5 [shape = 's32[1]{0}', space=sflag, size = 0x4, scoped, tag = 'scoped memory for tpu_custom_call.1']
    #allocation6 [shape = 's32[1]{0}', space=sflag, size = 0x4, scoped, tag = 'scoped memory for tpu_custom_call.1']
    #allocation7 [shape = 'u8[8192]{0}', space=vmem, size = 0x2000, scoped, tag = 'output window, operand 0, single buffered']
    %10 = vsyncpa [#allocation5], 0
    %11 = vsyncpa [#allocation6], 0
    // Predicated region
    $region2: #{tpu_custom_call.1} parent=1 // pred_check
      _
    $region3: #{tpu_custom_call.1} parent=1 // pred_check_branch
      %13 = sbr.rel (0) target = $region5
    $region4: #{tpu_custom_call.1} parent=1 // pred_region
      %s15 = ssub.s32 256, 256
      %16 = vsyncadd [#allocation5], %s15
      %s17 = sshll.u32 [#allocation4], 4
      %s18 = int_to_ptr.vmem [resolvable:$true] %s17
      %23 = dma.hbm_to_vmem [thread:$0]  %s0, 256, %s18, [#allocation5], 128, 128, 8
    $region5: #{tpu_custom_call.1} parent=1 // pred_fallthru
      _
    // Predicated region
    $region6: #{tpu_custom_call.1} parent=1 // pred_check
      _
    $region7: #{tpu_custom_call.1} parent=1 // pred_check_branch
      %25 = sbr.rel (0) target = $region9
    $region8: #{tpu_custom_call.1} parent=1 // pred_region
      _
    $region9: #{tpu_custom_call.1} parent=1 // pred_fallthru
      _
    // Predicated region
    $region10: #{tpu_custom_call.1} parent=1 // pred_check
      _
    $region11: #{tpu_custom_call.1} parent=1 // pred_check_branch
      %27 = sbr.rel (0) target = $region13
    $region12: #{tpu_custom_call.1} parent=1 // pred_region
      _
    $region13: #{tpu_custom_call.1} parent=1 // pred_fallthru
      _
    // Predicated region
    $region14: #{tpu_custom_call.1} parent=1 // pred_check
      _
    $region15: #{tpu_custom_call.1} parent=1 // pred_check_branch
      %29 = sbr.rel (0) target = $region17
    $region16: #{tpu_custom_call.1} parent=1 // pred_region
      _
    $region17: #{tpu_custom_call.1} parent=1 // pred_fallthru
      _
    // Predicated region
    $region18: #{tpu_custom_call.1} parent=1 // pred_check
      _
    $region19: #{tpu_custom_call.1} parent=1 // pred_check_branch
      %31 = sbr.rel (0) target = $region21
    $region20: #{tpu_custom_call.1} parent=1 // pred_region
      _
    $region21: #{tpu_custom_call.1} parent=1 // pred_fallthru
      _
    // Predicated region
    $region22: #{tpu_custom_call.1} parent=1 // pred_check
      _
    $region23: #{tpu_custom_call.1} parent=1 // pred_check_branch
      %33 = sbr.rel (0) target = $region25
    $region24: #{tpu_custom_call.1} parent=1 // pred_region
      %34 = dma.done [#allocation5], 256
    $region25: #{tpu_custom_call.1} parent=1 // pred_fallthru
      _
    %p35 = scmp.eq.s32.totalorder 0, 0
    // Predicated region
    $region26: #{tpu_custom_call.1} parent=1 // pred_check
      %p36 = pneg %p35
    $region27: #{tpu_custom_call.1} parent=1 // pred_check_branch
      %38 = sbr.rel (%p36) target = $region29
    $region28: #{tpu_custom_call.1} parent=1 // pred_region
      %vm39 = vcmask 785408
      %40 = vst.msk [vmem:[#allocation2] sm:$0xff] %vm39, 0.0
      %41 = vst.msk [vmem:[#allocation2 + $0x8] sm:$0xff] %vm39, 0.0
      %vm42 = vcmask 64512
      %43 = vst.msk [vmem:[#allocation3] sm:$0xff] %vm42, 0.0
      %44 = vst.msk [vmem:[#allocation3 + $0x8] sm:$0xff] %vm42, 0.0
    $region29: #{tpu_custom_call.1} parent=1 // pred_fallthru
      _
    %v45 = vld [vmem:[#allocation4] sm:$0xff]
    %v46 = vld [vmem:[#allocation4 + $0x8] sm:$0xff]
    %v47 = vld [vmem:[#allocation2] sm:$0xff]
    %v48 = vld [vmem:[#allocation2 + $0x8] sm:$0xff]
    %v49 = vld [vmem:[%s1] sm:$0xff]
    %v50 = vld [vmem:[%s1 + $0x8] sm:$0xff]
    %v51 = vld [vmem:[%s1 + $0x10] sm:$0xff]
    %v52 = vld [vmem:[%s1 + $0x18] sm:$0xff]
    %vm53 = vcmask 261120
    %v55 = vsel %vm53, %v45, 0
    %v58 = vsel %vm53, %v46, 0
    %60 = vmatprep.subr.mxu0 0.0
    %61 = vmatpush1.msra.mxu0 %v49
    %62 = vmatprep.subr.mxu0 0.0
    %63 = vmatpush1.msra.mxu0 %v50
    %64 = vmatprep.subr.mxu0 0.0
    %65 = vmatpush1.msra.mxu0 %v51
    %66 = vmatprep.subr.mxu0 0.0
    %67 = vmatpush1.msra.mxu0 %v52
    %68 = vmatprep.subr.mxu0 0.0
    %69 = vmatpush1.msra.mxu0 0.0
    %70 = vmatprep.subr.mxu0 0.0
    %71 = vmatpush1.msra.mxu0 0.0
    %72 = vmatprep.subr.mxu0 0.0
    %73 = vmatpush1.msra.mxu0 0.0
    %74 = vmatprep.subr.mxu0 0.0
    %75 = vmatpush1.msra.mxu0 0.0
    %76 = vmatprep.subr.mxu0 0.0
    %77 = vmatpush1.msra.mxu0 0.0
    %78 = vmatprep.subr.mxu0 0.0
    %79 = vmatpush1.msra.mxu0 0.0
    %80 = vmatprep.subr.mxu0 0.0
    %81 = vmatpush1.msra.mxu0 0.0
    %82 = vmatprep.subr.mxu0 0.0
    %83 = vmatpush1.msra.mxu0 0.0
    %84 = vmatprep.subr.mxu0 0.0
    %85 = vmatpush1.msra.mxu0 0.0
    %86 = vmatprep.subr.mxu0 0.0
    %87 = vmatpush1.msra.mxu0 0.0
    %88 = vmatprep.subr.mxu0 0.0
    %89 = vmatpush1.msra.mxu0 0.0
    %90 = vmatprep.subr.mxu0 0.0
    %91 = vmatpush1.msra.mxu0 0.0
    %92 = vmatprep.subr.mxu0 0.0
    %93 = vmatpush1.msra.mxu0 0.0
    %94 = vmatprep.subr.mxu0 0.0
    %95 = vmatpush1.msra.mxu0 0.0
    %96 = vmatprep.subr.mxu0 0.0
    %97 = vmatpush1.msra.mxu0 0.0
    %98 = vmatprep.subr.mxu0 0.0
    %99 = vmatpush1.msra.mxu0 0.0
    %100 = vmatprep.subr.mxu0 0.0
    %101 = vmatpush1.msra.mxu0 0.0
    %102 = vmatprep.subr.mxu0 0.0
    %103 = vmatpush1.msra.mxu0 0.0
    %104 = vmatprep.subr.mxu0 0.0
    %105 = vmatpush1.msra.mxu0 0.0
    %106 = vmatprep.subr.mxu0 0.0
    %107 = vmatpush1.msra.mxu0 0.0
    %108 = vmatprep.subr.mxu0 0.0
    %109 = vmatpush1.msra.mxu0 0.0
    %110 = vmatprep.subr.mxu0 0.0
    %111 = vmatpush1.msra.mxu0 0.0
    %112 = vmatprep.subr.mxu0 0.0
    %113 = vmatpush1.msra.mxu0 0.0
    %114 = vmatprep.subr.mxu0 0.0
    %115 = vmatpush1.msra.mxu0 0.0
    %116 = vmatprep.subr.mxu0 0.0
    %117 = vmatpush1.msra.mxu0 0.0
    %118 = vmatprep.subr.mxu0 0.0
    %119 = vmatpush1.msra.mxu0 0.0
    %120 = vmatprep.subr.mxu0 0.0
    %121 = vmatpush1.msra.mxu0 0.0
    %122 = vmatprep.subr.mxu0 0.0
    %123 = vmatpush1.msra.mxu0 0.0
    %124 = vmatprep.mubr.f32.mxu0 0.0
    %125 = vmatmul.mubr.f32.gmra.mrb[0].mxu0 %v55
    %v126 = vpop.f32.mrb[0].mxu0
    %v127 = vadd.f32 0.0, %v126
    %v128 = vpop.f32.mrb[0].mxu0
    %129 = vmatprep.mubr.f32.mxu0 0.0
    %130 = vmatmul.mubr.f32.gmra.mrb[0].mxu0 %v58
    %v131 = vpop.f32.mrb[0].mxu0
    %v132 = vadd.f32 0.0, %v131
    %v133 = vpop.f32.mrb[0].mxu0
    %134 = vdwg.mxu0
    %v135 = vadd.f32 %v47, %v127
    %v136 = vadd.f32 %v48, %v132
    %vm137 = vcmask 785408
    %138 = vst.msk [vmem:[#allocation2] sm:$0xff] %vm137, %v135
    %139 = vst.msk [vmem:[#allocation2 + $0x8] sm:$0xff] %vm137, %v136
    %v140 = vld [vmem:[#allocation3] sm:$0xff]
    %v141 = vld [vmem:[#allocation3 + $0x8] sm:$0xff]
    %v142 = vld [vmem:[%s3] sm:$0xff]
    %v143 = vld [vmem:[%s3 + $0x8] sm:$0xff]
    %v144 = vld [vmem:[%s3 + $0x10] sm:$0xff]
    %v145 = vld [vmem:[%s3 + $0x18] sm:$0xff]
    %146 = vmatprep.subr.mxu0 0.0
    %147 = vmatpush1.msra.mxu0 %v142
    %148 = vmatprep.subr.mxu0 0.0
    %149 = vmatpush1.msra.mxu0 %v143
    %150 = vmatprep.subr.mxu0 0.0
    %151 = vmatpush1.msra.mxu0 %v144
    %152 = vmatprep.subr.mxu0 0.0
    %153 = vmatpush1.msra.mxu0 %v145
    %154 = vmatprep.subr.mxu0 0.0
    %155 = vmatpush1.msra.mxu0 0.0
    %156 = vmatprep.subr.mxu0 0.0
    %157 = vmatpush1.msra.mxu0 0.0
    %158 = vmatprep.subr.mxu0 0.0
    %159 = vmatpush1.msra.mxu0 0.0
    %160 = vmatprep.subr.mxu0 0.0
    %161 = vmatpush1.msra.mxu0 0.0
    %162 = vmatprep.subr.mxu0 0.0
    %163 = vmatpush1.msra.mxu0 0.0
    %164 = vmatprep.subr.mxu0 0.0
    %165 = vmatpush1.msra.mxu0 0.0
    %166 = vmatprep.subr.mxu0 0.0
    %167 = vmatpush1.msra.mxu0 0.0
    %168 = vmatprep.subr.mxu0 0.0
    %169 = vmatpush1.msra.mxu0 0.0
    %170 = vmatprep.subr.mxu0 0.0
    %171 = vmatpush1.msra.mxu0 0.0
    %172 = vmatprep.subr.mxu0 0.0
    %173 = vmatpush1.msra.mxu0 0.0
    %174 = vmatprep.subr.mxu0 0.0
    %175 = vmatpush1.msra.mxu0 0.0
    %176 = vmatprep.subr.mxu0 0.0
    %177 = vmatpush1.msra.mxu0 0.0
    %178 = vmatprep.subr.mxu0 0.0
    %179 = vmatpush1.msra.mxu0 0.0
    %180 = vmatprep.subr.mxu0 0.0
    %181 = vmatpush1.msra.mxu0 0.0
    %182 = vmatprep.subr.mxu0 0.0
    %183 = vmatpush1.msra.mxu0 0.0
    %184 = vmatprep.subr.mxu0 0.0
    %185 = vmatpush1.msra.mxu0 0.0
    %186 = vmatprep.subr.mxu0 0.0
    %187 = vmatpush1.msra.mxu0 0.0
    %188 = vmatprep.subr.mxu0 0.0
    %189 = vmatpush1.msra.mxu0 0.0
    %190 = vmatprep.subr.mxu0 0.0
    %191 = vmatpush1.msra.mxu0 0.0
    %192 = vmatprep.subr.mxu0 0.0
    %193 = vmatpush1.msra.mxu0 0.0
    %194 = vmatprep.subr.mxu0 0.0
    %195 = vmatpush1.msra.mxu0 0.0
    %196 = vmatprep.subr.mxu0 0.0
    %197 = vmatpush1.msra.mxu0 0.0
    %198 = vmatprep.subr.mxu0 0.0
    %199 = vmatpush1.msra.mxu0 0.0
    %200 = vmatprep.subr.mxu0 0.0
    %201 = vmatpush1.msra.mxu0 0.0
    %202 = vmatprep.subr.mxu0 0.0
    %203 = vmatpush1.msra.mxu0 0.0
    %204 = vmatprep.subr.mxu0 0.0
    %205 = vmatpush1.msra.mxu0 0.0
    %206 = vmatprep.subr.mxu0 0.0
    %207 = vmatpush1.msra.mxu0 0.0
    %208 = vmatprep.subr.mxu0 0.0
    %209 = vmatpush1.msra.mxu0 0.0
    %210 = vmatprep.mubr.f32.mxu0 0.0
    %211 = vmatmul.mubr.f32.gmra.mrb[0].mxu0 %v55
    %v212 = vpop.f32.mrb[0].mxu0
    %v213 = vadd.f32 0.0, %v212
    %v214 = vpop.f32.mrb[0].mxu0
    %215 = vmatprep.mubr.f32.mxu0 0.0
    %216 = vmatmul.mubr.f32.gmra.mrb[0].mxu0 %v58
    %v217 = vpop.f32.mrb[0].mxu0
    %v218 = vadd.f32 0.0, %v217
    %v219 = vpop.f32.mrb[0].mxu0
    %220 = vdwg.mxu0
    %v221 = vadd.f32 %v140, %v213
    %v222 = vadd.f32 %v141, %v218
    %vm223 = vcmask 64512
    %224 = vst.msk [vmem:[#allocation3] sm:$0xff] %vm223, %v221
    %225 = vst.msk [vmem:[#allocation3 + $0x8] sm:$0xff] %vm223, %v222
    // Predicated region
    $region30: #{tpu_custom_call.1} parent=1 // pred_check
      %p226 = pneg %p35
    $region31: #{tpu_custom_call.1} parent=1 // pred_check_branch
      %228 = sbr.rel (%p226) target = $region33
    $region32: #{tpu_custom_call.1} parent=1 // pred_region
      %v229 = vld [vmem:[#allocation2] sm:$0xff]
      %v230 = vld [vmem:[#allocation2 + $0x8] sm:$0xff]
      %v231 = vld [vmem:[%s2] sm:$0x1]
      %v233 = vlaneseq
      %v234 = vshrl.u32 %v233, 7
      %v235 = vsub.s32 0, %v234
      %v236 = vrot.slane %v231, %v235
      %v238 = vadd.f32 %v229, %v236
      %v239 = vadd.f32 %v230, %v236
      %v240 = vld [vmem:[#allocation3] sm:$0xff]
      %v241 = vld [vmem:[#allocation3 + $0x8] sm:$0xff]
      %v242 = vld [vmem:[%s4] sm:$0xff]
      %v244 = vsel %vm223, %v240, 0
      %v247 = vsel %vm223, %v241, 0
      %249 = vmatprep.subr.mxu0 0.0
      %250 = vmatpush1.msra.mxu0 %v242
      %251 = vmatprep.subr.mxu0 0.0
      %252 = vmatpush1.msra.mxu0 0.0
      %253 = vmatprep.subr.mxu0 0.0
      %254 = vmatpush1.msra.mxu0 0.0
      %255 = vmatprep.subr.mxu0 0.0
      %256 = vmatpush1.msra.mxu0 0.0
      %257 = vmatprep.subr.mxu0 0.0
      %258 = vmatpush1.msra.mxu0 0.0
      %259 = vmatprep.subr.mxu0 0.0
      %260 = vmatpush1.msra.mxu0 0.0
      %261 = vmatprep.subr.mxu0 0.0
      %262 = vmatpush1.msra.mxu0 0.0
      %263 = vmatprep.subr.mxu0 0.0
      %264 = vmatpush1.msra.mxu0 0.0
      %265 = vmatprep.subr.mxu0 0.0
      %266 = vmatpush1.msra.mxu0 0.0
      %267 = vmatprep.subr.mxu0 0.0
      %268 = vmatpush1.msra.mxu0 0.0
      %269 = vmatprep.subr.mxu0 0.0
      %270 = vmatpush1.msra.mxu0 0.0
      %271 = vmatprep.subr.mxu0 0.0
      %272 = vmatpush1.msra.mxu0 0.0
      %273 = vmatprep.subr.mxu0 0.0
      %274 = vmatpush1.msra.mxu0 0.0
      %275 = vmatprep.subr.mxu0 0.0
      %276 = vmatpush1.msra.mxu0 0.0
      %277 = vmatprep.subr.mxu0 0.0
      %278 = vmatpush1.msra.mxu0 0.0
      %279 = vmatprep.subr.mxu0 0.0
      %280 = vmatpush1.msra.mxu0 0.0
      %281 = vmatprep.subr.mxu0 0.0
      %282 = vmatpush1.msra.mxu0 0.0
      %283 = vmatprep.subr.mxu0 0.0
      %284 = vmatpush1.msra.mxu0 0.0
      %285 = vmatprep.subr.mxu0 0.0
      %286 = vmatpush1.msra.mxu0 0.0
      %287 = vmatprep.subr.mxu0 0.0
      %288 = vmatpush1.msra.mxu0 0.0
      %289 = vmatprep.subr.mxu0 0.0
      %290 = vmatpush1.msra.mxu0 0.0
      %291 = vmatprep.subr.mxu0 0.0
      %292 = vmatpush1.msra.mxu0 0.0
      %293 = vmatprep.subr.mxu0 0.0
      %294 = vmatpush1.msra.mxu0 0.0
      %295 = vmatprep.subr.mxu0 0.0
      %296 = vmatpush1.msra.mxu0 0.0
      %297 = vmatprep.subr.mxu0 0.0
      %298 = vmatpush1.msra.mxu0 0.0
      %299 = vmatprep.subr.mxu0 0.0
      %300 = vmatpush1.msra.mxu0 0.0
      %301 = vmatprep.subr.mxu0 0.0
      %302 = vmatpush1.msra.mxu0 0.0
      %303 = vmatprep.subr.mxu0 0.0
      %304 = vmatpush1.msra.mxu0 0.0
      %305 = vmatprep.subr.mxu0 0.0
      %306 = vmatpush1.msra.mxu0 0.0
      %307 = vmatprep.subr.mxu0 0.0
      %308 = vmatpush1.msra.mxu0 0.0
      %309 = vmatprep.subr.mxu0 0.0
      %310 = vmatpush1.msra.mxu0 0.0
      %311 = vmatprep.subr.mxu0 0.0
      %312 = vmatpush1.msra.mxu0 0.0
      %313 = vmatprep.mubr.f32.mxu0 0.0
      %314 = vmatmul.mubr.f32.gmra.mrb[0].mxu0 %v244
      %v315 = vpop.f32.mrb[0].mxu0
      %v316 = vadd.f32 0.0, %v315
      %v317 = vpop.f32.mrb[0].mxu0
      %318 = vmatprep.mubr.f32.mxu0 0.0
      %319 = vmatmul.mubr.f32.gmra.mrb[0].mxu0 %v247
      %v320 = vpop.f32.mrb[0].mxu0
      %v321 = vadd.f32 0.0, %v320
      %v322 = vpop.f32.mrb[0].mxu0
      %323 = vdwg.mxu0
      %v324 = vadd.f32 %v238, %v316
      %v325 = vadd.f32 %v239, %v321
      %326 = vst.msk [vmem:[#allocation7] sm:$0xff] %vm137, %v324
      %327 = vst.msk [vmem:[#allocation7 + $0x8] sm:$0xff] %vm137, %v325
    $region33: #{tpu_custom_call.1} parent=1 // pred_fallthru
      _
    // Predicated region
    $region34: #{tpu_custom_call.1} parent=1 // pred_check
      _
    $region35: #{tpu_custom_call.1} parent=1 // pred_check_branch
      %329 = sbr.rel (0) target = $region37
    $region36: #{tpu_custom_call.1} parent=1 // pred_region
      %s331 = ssub.s32 256, 256
      %332 = vsyncadd [#allocation6], %s331
      %s333 = sshll.u32 [#allocation7], 4
      %s334 = int_to_ptr.vmem [resolvable:$true] %s333
      %339 = dma.vmem_to_hbm [thread:$0]  %s334, 256, %s5, [#allocation6], 128, 128, 8
    $region37: #{tpu_custom_call.1} parent=1 // pred_fallthru
      _
    // Predicated region
    $region38: #{tpu_custom_call.1} parent=1 // pred_check
      _
    $region39: #{tpu_custom_call.1} parent=1 // pred_check_branch
      %341 = sbr.rel (0) target = $region41
    $region40: #{tpu_custom_call.1} parent=1 // pred_region
      %342 = dma.done [#allocation6], 256
    $region41: #{tpu_custom_call.1} parent=1 // pred_fallthru
      _
    %343 = vsyncpa [#allocation5], 1
    %344 = vsyncpa [#allocation6], 1

</llo_original>
